<compile_context>
chip_gen: v6e
topology: v6e:2x2x1
jax: 0.10.0
libtpu: 0.0.40
codegen_flags: <defaults>
</compile_context>

<pallas_src>
import numpy as np
import jax
import jax.numpy as jnp
from jax import lax
from jax.experimental import pallas as pl
from jax.experimental.pallas import tpu as pltpu


# ----------------------------------------------------------------------------
# Kernels
# ----------------------------------------------------------------------------

def _fused_kernel(num_models: int, num_classes: int, use_softmax: bool):
    """One batch tile: single fused matmul against a (D, N) weight block.

    N = M*C for 'softmax' (per-model lane slices), N = C for 'logits'
    (weights pre-summed wrapper-side).
    """

    def kernel(x_ref, w_ref, b_ref, out_ref):
        # In-kernel bf16 cast of x (hidden under the DMA); weights arrive bf16.
        x = x_ref[...].astype(jnp.bfloat16)                       # (TB, D)
        logits = lax.dot_general(                                 # (TB, N) f32
            x, w_ref[...],
            dimension_numbers=(((1,), (0,)), ((), ())),
            preferred_element_type=jnp.float32,
        ) + b_ref[...]                                            # (1, N) bias

        if not use_softmax:
            out_ref[...] = logits.astype(out_ref.dtype)           # N == C here
            return

        acc = jnp.zeros(out_ref.shape, jnp.float32)
        for m in range(num_models):                               # trace-time unroll
            lg = logits[:, m * num_classes:(m + 1) * num_classes]
            z = lg - jnp.max(lg, axis=-1, keepdims=True)          # stable softmax, f32
            e = jnp.exp(z)
            inv = pl.reciprocal(jnp.sum(e, axis=-1, keepdims=True), approx=True)
            acc = acc + e * inv
        out_ref[...] = acc.astype(out_ref.dtype)

    return kernel


def _sampling_kernel():
    """One batch tile against the single sub-model chosen via scalar prefetch."""

    def kernel(sidx_ref, x_ref, w_ref, b_ref, out_ref):
        # sidx_ref is only consumed by the index_maps (model selection).
        del sidx_ref
        x = x_ref[...].astype(jnp.bfloat16)                       # (TB, D)
        logits = lax.dot_general(
            x, w_ref[...],                                        # (D, C) bf16
            dimension_numbers=(((1,), (0,)), ((), ())),
            preferred_element_type=jnp.float32,
        ) + b_ref[...]                                            # (1, C)
        out_ref[...] = logits.astype(out_ref.dtype)

    return kernel


# ----------------------------------------------------------------------------
# Wrapper
# ----------------------------------------------------------------------------

def prepare_merged_params(weights, biases, merge_mode):
    """One-time parameter packing (setup time, NOT per forward call).

    weights: (M, D, C) f32, biases: (M, C) f32.
    """
    assert merge_mode in ("logits", "softmax", "sampling")
    M, D, C = weights.shape
    if merge_mode == "logits":
        # sum_m (x W_m + b_m) == x (sum_m W_m) + sum_m b_m   (exact)
        w = jnp.sum(weights, axis=0).astype(jnp.bfloat16)                 # (D, C)
        b = jnp.sum(biases, axis=0).reshape(1, C).astype(jnp.float32)     # (1, C)
    elif merge_mode == "softmax":
        # Fused (D, M*C): K on sublanes, N on lanes — natural MXU orientation.
        w = jnp.transpose(weights, (1, 0, 2)).reshape(D, M * C).astype(jnp.bfloat16)
        b = biases.reshape(1, M * C).astype(jnp.float32)
    else:  # sampling — keep the stack; the chosen model is selected by index_map
        w = weights.astype(jnp.bfloat16)                                   # (M, D, C)
        b = biases.reshape(M, 1, C).astype(jnp.float32)                    # (M, 1, C)
    return {"mode": merge_mode, "w": w, "b": b, "M": M, "C": C, "D": D}


def _choose_batch_tile(B):
    """Batch tile: big tiles for HBM roofline, >= 2 grid steps at large B (v7x)."""
    b8 = ((B + 7) // 8) * 8
    if b8 <= 512:
        return b8                                   # single tile; overhead dominates
    half = ((b8 // 2 + 255) // 256) * 256           # >= 2 steps for megacore sharding
    return min(1024, half)


def merged_model_forward(x_nchw, params, sample_index=None, sample_key=None):
    """x_nchw: (B, Cin, H, W) f32; params from prepare_merged_params."""
    mode, M, C, D = params["mode"], params["M"], params["C"], params["D"]
    B = x_nchw.shape[0]
    assert int(np.prod(x_nchw.shape[1:])) == D

    # Keep x in f32 — the bf16 cast happens inside the kernel, fused with the load.
    x2d = x_nchw.reshape(B, D)

    TB = _choose_batch_tile(B)
    B_pad = ((B + TB - 1) // TB) * TB
    if B_pad != B:
        x2d = jnp.pad(x2d, ((0, B_pad - B), (0, 0)))
    grid = (B_pad // TB,)

    cparams = pltpu.CompilerParams(dimension_semantics=("parallel",))

    if mode in ("softmax", "logits"):
        N = M * C if mode == "softmax" else C
        out = pl.pallas_call(
            _fused_kernel(M, C, mode == "softmax"),
            out_shape=jax.ShapeDtypeStruct((B_pad, C), jnp.float32),
            grid_spec=pltpu.PrefetchScalarGridSpec(
                num_scalar_prefetch=0,
                grid=grid,
                in_specs=[
                    pl.BlockSpec((TB, D), lambda i: (i, 0)),     # batch tile of x (f32)
                    pl.BlockSpec((D, N), lambda i: (0, 0)),      # fused weight block
                    pl.BlockSpec((1, N), lambda i: (0, 0)),      # fused bias row
                ],
                out_specs=pl.BlockSpec((TB, C), lambda i: (i, 0)),
            ),
            compiler_params=cparams,
        )(x2d, params["w"], params["b"])
    else:  # sampling
        if sample_index is None:
            if sample_key is not None:
                sidx = jax.random.randint(sample_key, (1,), 0, M, dtype=jnp.int32)
            else:
                # TODO(synk): torch uses Python random.randint per forward; kept as a
                # host fallback, but it's passed as a device scalar so jit won't retrace.
                import random
                sidx = jnp.array([random.randint(0, M - 1)], dtype=jnp.int32)
        else:
            sidx = jnp.asarray(sample_index, jnp.int32).reshape(1)

        out = pl.pallas_call(
            _sampling_kernel(),
            out_shape=jax.ShapeDtypeStruct((B_pad, C), jnp.float32),
            grid_spec=pltpu.PrefetchScalarGridSpec(
                num_scalar_prefetch=1,                           # sidx -> SMEM
                grid=grid,
                in_specs=[
                    pl.BlockSpec((TB, D), lambda i, s: (i, 0)),
                    # Only the chosen sub-model's weights/bias are DMA'd.
                    pl.BlockSpec((None, D, C), lambda i, s: (s[0], 0, 0)),
                    pl.BlockSpec((None, 1, C), lambda i, s: (s[0], 0, 0)),
                ],
                out_specs=pl.BlockSpec((TB, C), lambda i, s: (i, 0)),
            ),
            compiler_params=cparams,
        )(sidx, x2d, params["w"], params["b"])

    return out[:B] if B_pad != B else out


# ----------------------------------------------------------------------------
# Reference + self-test
# ----------------------------------------------------------------------------

def _reference(x_nchw, weights, biases, merge_mode, sample_index=None):
    # Mirror the kernel's intended bf16 quantization of x / W so the comparison
    # isolates kernel-side differences (accumulation order, approx reciprocal).
    B = x_nchw.shape[0]
    x2d = x_nchw.reshape(B, -1).astype(jnp.bfloat16).astype(jnp.float32)
    if merge_mode == "logits":
        w = jnp.sum(weights, axis=0).astype(jnp.bfloat16).astype(jnp.float32)
        b = jnp.sum(biases, axis=0)
        return x2d @ w + b[None, :]
    w = weights.astype(jnp.bfloat16).astype(jnp.float32)
    logits = jnp.einsum("bd,mdc->mbc", x2d, w) + biases[:, None, :]
    if merge_mode == "softmax":
        return jax.nn.softmax(logits, axis=-1).sum(axis=0)
    return logits[sample_index]


if __name__ == "__main__":
    # Small shapes consistent with a CIFAR-style linear classifier ensemble.
    B, CIN, H, W = 2, 4, 16, 16
    NUM_MODELS, NUM_CLASSES = 3, 10
    D = CIN * H * W

    key = jax.random.PRNGKey(0)
    kx, kw, kb = jax.random.split(key, 3)
    x = jax.random.normal(kx, (B, CIN, H, W), dtype=jnp.float32)
    weights = 0.05 * jax.random.normal(kw, (NUM_MODELS, D, NUM_CLASSES),
                                       dtype=jnp.float32)
    biases = 0.1 * jax.random.normal(kb, (NUM_MODELS, NUM_CLASSES),
                                     dtype=jnp.float32)

    ok = True
    for mode in ("softmax", "logits", "sampling"):
        params = prepare_merged_params(weights, biases, mode)   # one-time setup
        sample_index = 1 if mode == "sampling" else None
        out = merged_model_forward(x, params, sample_index=sample_index)
        out = jax.block_until_ready(out)
        ref = _reference(x, weights, biases, mode, sample_index=sample_index)
        if not np.allclose(np.asarray(out), np.asarray(ref), atol=2e-2, rtol=2e-2):
            ok = False
            print(f"mismatch in mode {mode}")

    if ok:
        print("KERNEL_OK")
</pallas_src>

<mosaic_0001>
module attributes {stable_mosaic.version = 11 : i64} {
  func.func @kernel(%arg0: i32, %arg1: memref<8x1024xf32, #tpu.memory_space<vmem>>, %arg2: memref<1024x30xbf16, #tpu.memory_space<vmem>>, %arg3: memref<1x30xf32, #tpu.memory_space<vmem>>, %arg4: memref<8x10xf32, #tpu.memory_space<vmem>>) attributes {dimension_semantics = [#tpu.dimension_semantics<parallel>], iteration_bounds = array<i64: 1>, scalar_prefetch = 0 : i64, scratch_operands = 0 : i64, tpu.core_type = #tpu.core_type<tc>, window_params = [{transform_indices = @transform_0, window_bounds = array<i64: 8, 1024>}, {pipeline_mode = #tpu.pipeline_mode<synchronous>, transform_indices = @transform_1, window_bounds = array<i64: 1024, 30>}, {pipeline_mode = #tpu.pipeline_mode<synchronous>, transform_indices = @transform_2, window_bounds = array<i64: 1, 30>}, {transform_indices = @transform_3, window_bounds = array<i64: 8, 10>}]} {
    %c0 = arith.constant 0 : index
    %c0_0 = arith.constant 0 : index
    %0 = vector.load %arg1[%c0, %c0_0] : memref<8x1024xf32, #tpu.memory_space<vmem>>, vector<8x1024xf32>
    %1 = arith.truncf %0 : vector<8x1024xf32> to vector<8x1024xbf16>
    %c0_1 = arith.constant 0 : index
    %c0_2 = arith.constant 0 : index
    %2 = vector.load %arg2[%c0_1, %c0_2] : memref<1024x30xbf16, #tpu.memory_space<vmem>>, vector<1024x30xbf16>
    %cst = arith.constant dense<0.000000e+00> : vector<8x30xf32>
    %3 = tpu.matmul %1, %2, %cst {dimension_numbers = #tpu.dot_dimension_numbers<[1], [0], [0], [1], [0, 0, 1, 1], [], []>} : vector<8x1024xbf16>, vector<1024x30xbf16>, vector<8x30xf32> -> vector<8x30xf32>
    %c0_3 = arith.constant 0 : index
    %c0_4 = arith.constant 0 : index
    %4 = vector.load %arg3[%c0_3, %c0_4] : memref<1x30xf32, #tpu.memory_space<vmem>>, vector<1x30xf32>
    %5 = vector.broadcast %4 : vector<1x30xf32> to vector<8x30xf32>
    %6 = arith.addf %3, %5 : vector<8x30xf32>
    %cst_5 = arith.constant 0.000000e+00 : f32
    %7 = vector.broadcast %cst_5 : f32 to vector<8x10xf32>
    %8 = vector.extract_strided_slice %6 {offsets = [0, 0], sizes = [8, 10], strides = [1, 1]} : vector<8x30xf32> to vector<8x10xf32>
    %cst_6 = arith.constant dense<0xFF800000> : vector<8xf32>
    %9 = vector.multi_reduction <maximumf>, %8, %cst_6 [1] : vector<8x10xf32> to vector<8xf32>
    %10 = vector.shape_cast %9 : vector<8xf32> to vector<8x1xf32>
    %11 = vector.broadcast %10 : vector<8x1xf32> to vector<8x10xf32>
    %12 = arith.subf %8, %11 : vector<8x10xf32>
    %13 = math.exp %12 : vector<8x10xf32>
    %cst_7 = arith.constant dense<0.000000e+00> : vector<8xf32>
    %14 = vector.multi_reduction <add>, %13, %cst_7 [1] : vector<8x10xf32> to vector<8xf32>
    %15 = vector.shape_cast %14 : vector<8xf32> to vector<8x1xf32>
    %16 = tpu.reciprocal %15 {approx = true} : vector<8x1xf32> -> vector<8x1xf32>
    %17 = vector.broadcast %16 : vector<8x1xf32> to vector<8x10xf32>
    %18 = arith.mulf %13, %17 : vector<8x10xf32>
    %19 = arith.addf %7, %18 : vector<8x10xf32>
    %20 = vector.extract_strided_slice %6 {offsets = [0, 10], sizes = [8, 10], strides = [1, 1]} : vector<8x30xf32> to vector<8x10xf32>
    %cst_8 = arith.constant dense<0xFF800000> : vector<8xf32>
    %21 = vector.multi_reduction <maximumf>, %20, %cst_8 [1] : vector<8x10xf32> to vector<8xf32>
    %22 = vector.shape_cast %21 : vector<8xf32> to vector<8x1xf32>
    %23 = vector.broadcast %22 : vector<8x1xf32> to vector<8x10xf32>
    %24 = arith.subf %20, %23 : vector<8x10xf32>
    %25 = math.exp %24 : vector<8x10xf32>
    %cst_9 = arith.constant dense<0.000000e+00> : vector<8xf32>
    %26 = vector.multi_reduction <add>, %25, %cst_9 [1] : vector<8x10xf32> to vector<8xf32>
    %27 = vector.shape_cast %26 : vector<8xf32> to vector<8x1xf32>
    %28 = tpu.reciprocal %27 {approx = true} : vector<8x1xf32> -> vector<8x1xf32>
    %29 = vector.broadcast %28 : vector<8x1xf32> to vector<8x10xf32>
    %30 = arith.mulf %25, %29 : vector<8x10xf32>
    %31 = arith.addf %19, %30 : vector<8x10xf32>
    %32 = vector.extract_strided_slice %6 {offsets = [0, 20], sizes = [8, 10], strides = [1, 1]} : vector<8x30xf32> to vector<8x10xf32>
    %cst_10 = arith.constant dense<0xFF800000> : vector<8xf32>
    %33 = vector.multi_reduction <maximumf>, %32, %cst_10 [1] : vector<8x10xf32> to vector<8xf32>
    %34 = vector.shape_cast %33 : vector<8xf32> to vector<8x1xf32>
    %35 = vector.broadcast %34 : vector<8x1xf32> to vector<8x10xf32>
    %36 = arith.subf %32, %35 : vector<8x10xf32>
    %37 = math.exp %36 : vector<8x10xf32>
    %cst_11 = arith.constant dense<0.000000e+00> : vector<8xf32>
    %38 = vector.multi_reduction <add>, %37, %cst_11 [1] : vector<8x10xf32> to vector<8xf32>
    %39 = vector.shape_cast %38 : vector<8xf32> to vector<8x1xf32>
    %40 = tpu.reciprocal %39 {approx = true} : vector<8x1xf32> -> vector<8x1xf32>
    %41 = vector.broadcast %40 : vector<8x1xf32> to vector<8x10xf32>
    %42 = arith.mulf %37, %41 : vector<8x10xf32>
    %43 = arith.addf %31, %42 : vector<8x10xf32>
    %c0_12 = arith.constant 0 : index
    %c0_13 = arith.constant 0 : index
    %44 = vector.load %arg4[%c0_12, %c0_13] : memref<8x10xf32, #tpu.memory_space<vmem>>, vector<8x10xf32>
    tpu.vector_store %arg4[%c0_12, %c0_13], %43 {strides = array<i32>} : memref<8x10xf32, #tpu.memory_space<vmem>>, vector<8x10xf32>,
    return
  }
  func.func @transform_0(%arg0: i32) -> (i32, i32) {
    %c0_i32 = arith.constant 0 : i32
    %c0_i32_0 = arith.constant 0 : i32
    return %arg0, %c0_i32 : i32, i32
  }
  func.func @transform_1(%arg0: i32) -> (i32, i32) {
    %c0_i32 = arith.constant 0 : i32
    %c0_i32_0 = arith.constant 0 : i32
    %c0_i32_1 = arith.constant 0 : i32
    return %c0_i32, %c0_i32_0 : i32, i32
  }
  func.func @transform_2(%arg0: i32) -> (i32, i32) {
    %c0_i32 = arith.constant 0 : i32
    %c0_i32_0 = arith.constant 0 : i32
    %c0_i32_1 = arith.constant 0 : i32
    return %c0_i32, %c0_i32_0 : i32, i32
  }
  func.func @transform_3(%arg0: i32) -> (i32, i32) {
    %c0_i32 = arith.constant 0 : i32
    %c0_i32_0 = arith.constant 0 : i32
    return %arg0, %c0_i32 : i32, i32
  }
}

</mosaic_0001>

<llo_original>
// kernel: tpu_custom_call.1
$region0: #{tpu_custom_call.1}
  #allocation0 [shape = 'u32[]', space=smem, size = 0x4, offset = 0x4, fixed_abs, tag = 'smem constant byte address 0x4 - core index']
  #allocation1 [shape = 'u32[144,128]{1,0:T(1,128)}', space=vmem, size = 0x12000, scoped, tag = 'internal scratch']
  %s0 = inlined_call_operand.vmem [shape: f32[8,1024], index: 0, kind: input, shape index: {}]
  %s1 = inlined_call_operand.vmem [shape: bf16[1024,30], index: 1, kind: input, shape index: {}]
  %s2 = inlined_call_operand.vmem [shape: f32[1,30], index: 2, kind: input, shape index: {}]
  %s3 = inlined_call_operand.hbm [shape: f32[8,10], index: 3, kind: output, shape index: {}]
  %s4 = sld [smem:[#allocation0]]
  $region22: #{tpu_custom_call.1} parent=0
    _
  %s6 = ssub.s32 1, %s4
  %s7 = scalar_select 0, %s6, %s4
  $region1: #{tpu_custom_call.1} parent=0
    #allocation2 [shape = 'u8[4096]{0}', space=vmem, size = 0x1000, scoped, tag = 'output window, operand 0, single buffered']
    #allocation3 [shape = 's32[1]{0}', space=sflag, size = 0x4, scoped, tag = 'scoped memory for tpu_custom_call.1']
    %8 = vsyncpa [#allocation3], 0
    // Predicated region
    $region2: #{tpu_custom_call.1} parent=1 // pred_check
      _
    $region3: #{tpu_custom_call.1} parent=1 // pred_check_branch
      %10 = sbr.rel (0) target = $region5
    $region4: #{tpu_custom_call.1} parent=1 // pred_region
      _
    $region5: #{tpu_custom_call.1} parent=1 // pred_fallthru
      _
    // Predicated region
    $region6: #{tpu_custom_call.1} parent=1 // pred_check
      _
    $region7: #{tpu_custom_call.1} parent=1 // pred_check_branch
      %12 = sbr.rel (0) target = $region9
    $region8: #{tpu_custom_call.1} parent=1 // pred_region
      _
    $region9: #{tpu_custom_call.1} parent=1 // pred_fallthru
      _
    // Predicated region
    $region10: #{tpu_custom_call.1} parent=1 // pred_check
      _
    $region11: #{tpu_custom_call.1} parent=1 // pred_check_branch
      %14 = sbr.rel (0) target = $region13
    $region12: #{tpu_custom_call.1} parent=1 // pred_region
      _
    $region13: #{tpu_custom_call.1} parent=1 // pred_fallthru
      _
    %v16 = vld [vmem:[%s0] sm:$0xff]
    %v17 = vld [vmem:[%s0 + $0x8] sm:$0xff]
    %v18 = vld [vmem:[%s0 + $0x10] sm:$0xff]
    %v19 = vld [vmem:[%s0 + $0x18] sm:$0xff]
    %v20 = vld [vmem:[%s0 + $0x20] sm:$0xff]
    %v21 = vld [vmem:[%s0 + $0x28] sm:$0xff]
    %v22 = vld [vmem:[%s0 + $0x30] sm:$0xff]
    %v23 = vld [vmem:[%s0 + $0x38] sm:$0xff]
    %v24 = vpack.c.bf16 %v16, %v16
    %v25 = vpack.c.bf16 %v17, %v17
    %v26 = vpack.c.bf16 %v18, %v18
    %v27 = vpack.c.bf16 %v19, %v19
    %v28 = vpack.c.bf16 %v20, %v20
    %v29 = vpack.c.bf16 %v21, %v21
    %v30 = vpack.c.bf16 %v22, %v22
    %v31 = vpack.c.bf16 %v23, %v23
    %v32 = vld [vmem:[%s1] sm:$0xf]
    %v33 = vld [vmem:[%s1 + $0x4] sm:$0xf]
    %v34 = vld [vmem:[%s1 + $0x8] sm:$0xf]
    %v35 = vld [vmem:[%s1 + $0xc] sm:$0xf]
    %v36 = vld [vmem:[%s1 + $0x10] sm:$0xf]
    %v37 = vld [vmem:[%s1 + $0x14] sm:$0xf]
    %v38 = vld [vmem:[%s1 + $0x18] sm:$0xf]
    %v39 = vld [vmem:[%s1 + $0x1c] sm:$0xf]
    %v40 = vld [vmem:[%s1 + $0x20] sm:$0xf]
    %v41 = vld [vmem:[%s1 + $0x24] sm:$0xf]
    %v42 = vld [vmem:[%s1 + $0x28] sm:$0xf]
    %v43 = vld [vmem:[%s1 + $0x2c] sm:$0xf]
    %v44 = vld [vmem:[%s1 + $0x30] sm:$0xf]
    %v45 = vld [vmem:[%s1 + $0x34] sm:$0xf]
    %v46 = vld [vmem:[%s1 + $0x38] sm:$0xf]
    %v47 = vld [vmem:[%s1 + $0x3c] sm:$0xf]
    %v48 = vld [vmem:[%s1 + $0x40] sm:$0xf]
    %v49 = vld [vmem:[%s1 + $0x44] sm:$0xf]
    %v50 = vld [vmem:[%s1 + $0x48] sm:$0xf]
    %v51 = vld [vmem:[%s1 + $0x4c] sm:$0xf]
    %v52 = vld [vmem:[%s1 + $0x50] sm:$0xf]
    %v53 = vld [vmem:[%s1 + $0x54] sm:$0xf]
    %v54 = vld [vmem:[%s1 + $0x58] sm:$0xf]
    %v55 = vld [vmem:[%s1 + $0x5c] sm:$0xf]
    %v56 = vld [vmem:[%s1 + $0x60] sm:$0xf]
    %v57 = vld [vmem:[%s1 + $0x64] sm:$0xf]
    %v58 = vld [vmem:[%s1 + $0x68] sm:$0xf]
    %v59 = vld [vmem:[%s1 + $0x6c] sm:$0xf]
    %v60 = vld [vmem:[%s1 + $0x70] sm:$0xf]
    %v61 = vld [vmem:[%s1 + $0x74] sm:$0xf]
    %v62 = vld [vmem:[%s1 + $0x78] sm:$0xf]
    %v63 = vld [vmem:[%s1 + $0x7c] sm:$0xf]
    %v64 = vld [vmem:[%s1 + $0x80] sm:$0xf]
    %v65 = vld [vmem:[%s1 + $0x84] sm:$0xf]
    %v66 = vld [vmem:[%s1 + $0x88] sm:$0xf]
    %v67 = vld [vmem:[%s1 + $0x8c] sm:$0xf]
    %v68 = vld [vmem:[%s1 + $0x90] sm:$0xf]
    %v69 = vld [vmem:[%s1 + $0x94] sm:$0xf]
    %v70 = vld [vmem:[%s1 + $0x98] sm:$0xf]
    %v71 = vld [vmem:[%s1 + $0x9c] sm:$0xf]
    %v72 = vld [vmem:[%s1 + $0xa0] sm:$0xf]
    %v73 = vld [vmem:[%s1 + $0xa4] sm:$0xf]
    %v74 = vld [vmem:[%s1 + $0xa8] sm:$0xf]
    %v75 = vld [vmem:[%s1 + $0xac] sm:$0xf]
    %v76 = vld [vmem:[%s1 + $0xb0] sm:$0xf]
    %v77 = vld [vmem:[%s1 + $0xb4] sm:$0xf]
    %v78 = vld [vmem:[%s1 + $0xb8] sm:$0xf]
    %v79 = vld [vmem:[%s1 + $0xbc] sm:$0xf]
    %v80 = vld [vmem:[%s1 + $0xc0] sm:$0xf]
    %v81 = vld [vmem:[%s1 + $0xc4] sm:$0xf]
    %v82 = vld [vmem:[%s1 + $0xc8] sm:$0xf]
    %v83 = vld [vmem:[%s1 + $0xcc] sm:$0xf]
    %v84 = vld [vmem:[%s1 + $0xd0] sm:$0xf]
    %v85 = vld [vmem:[%s1 + $0xd4] sm:$0xf]
    %v86 = vld [vmem:[%s1 + $0xd8] sm:$0xf]
    %v87 = vld [vmem:[%s1 + $0xdc] sm:$0xf]
    %v88 = vld [vmem:[%s1 + $0xe0] sm:$0xf]
    %v89 = vld [vmem:[%s1 + $0xe4] sm:$0xf]
    %v90 = vld [vmem:[%s1 + $0xe8] sm:$0xf]
    %v91 = vld [vmem:[%s1 + $0xec] sm:$0xf]
    %v92 = vld [vmem:[%s1 + $0xf0] sm:$0xf]
    %v93 = vld [vmem:[%s1 + $0xf4] sm:$0xf]
    %v94 = vld [vmem:[%s1 + $0xf8] sm:$0xf]
    %v95 = vld [vmem:[%s1 + $0xfc] sm:$0xf]
    %v96 = vld [vmem:[%s1 + $0x100] sm:$0xf]
    %v97 = vld [vmem:[%s1 + $0x104] sm:$0xf]
    %v98 = vld [vmem:[%s1 + $0x108] sm:$0xf]
    %v99 = vld [vmem:[%s1 + $0x10c] sm:$0xf]
    %v100 = vld [vmem:[%s1 + $0x110] sm:$0xf]
    %v101 = vld [vmem:[%s1 + $0x114] sm:$0xf]
    %v102 = vld [vmem:[%s1 + $0x118] sm:$0xf]
    %v103 = vld [vmem:[%s1 + $0x11c] sm:$0xf]
    %v104 = vld [vmem:[%s1 + $0x120] sm:$0xf]
    %v105 = vld [vmem:[%s1 + $0x124] sm:$0xf]
    %v106 = vld [vmem:[%s1 + $0x128] sm:$0xf]
    %v107 = vld [vmem:[%s1 + $0x12c] sm:$0xf]
    %v108 = vld [vmem:[%s1 + $0x130] sm:$0xf]
    %v109 = vld [vmem:[%s1 + $0x134] sm:$0xf]
    %v110 = vld [vmem:[%s1 + $0x138] sm:$0xf]
    %v111 = vld [vmem:[%s1 + $0x13c] sm:$0xf]
    %v112 = vld [vmem:[%s1 + $0x140] sm:$0xf]
    %v113 = vld [vmem:[%s1 + $0x144] sm:$0xf]
    %v114 = vld [vmem:[%s1 + $0x148] sm:$0xf]
    %v115 = vld [vmem:[%s1 + $0x14c] sm:$0xf]
    %v116 = vld [vmem:[%s1 + $0x150] sm:$0xf]
    %v117 = vld [vmem:[%s1 + $0x154] sm:$0xf]
    %v118 = vld [vmem:[%s1 + $0x158] sm:$0xf]
    %v119 = vld [vmem:[%s1 + $0x15c] sm:$0xf]
    %v120 = vld [vmem:[%s1 + $0x160] sm:$0xf]
    %v121 = vld [vmem:[%s1 + $0x164] sm:$0xf]
    %v122 = vld [vmem:[%s1 + $0x168] sm:$0xf]
    %v123 = vld [vmem:[%s1 + $0x16c] sm:$0xf]
    %v124 = vld [vmem:[%s1 + $0x170] sm:$0xf]
    %v125 = vld [vmem:[%s1 + $0x174] sm:$0xf]
    %v126 = vld [vmem:[%s1 + $0x178] sm:$0xf]
    %v127 = vld [vmem:[%s1 + $0x17c] sm:$0xf]
    %v128 = vld [vmem:[%s1 + $0x180] sm:$0xf]
    %v129 = vld [vmem:[%s1 + $0x184] sm:$0xf]
    %v130 = vld [vmem:[%s1 + $0x188] sm:$0xf]
    %v131 = vld [vmem:[%s1 + $0x18c] sm:$0xf]
    %v132 = vld [vmem:[%s1 + $0x190] sm:$0xf]
    %v133 = vld [vmem:[%s1 + $0x194] sm:$0xf]
    %v134 = vld [vmem:[%s1 + $0x198] sm:$0xf]
    %v135 = vld [vmem:[%s1 + $0x19c] sm:$0xf]
    %v136 = vld [vmem:[%s1 + $0x1a0] sm:$0xf]
    %v137 = vld [vmem:[%s1 + $0x1a4] sm:$0xf]
    %v138 = vld [vmem:[%s1 + $0x1a8] sm:$0xf]
    %v139 = vld [vmem:[%s1 + $0x1ac] sm:$0xf]
    %v140 = vld [vmem:[%s1 + $0x1b0] sm:$0xf]
    %v141 = vld [vmem:[%s1 + $0x1b4] sm:$0xf]
    %v142 = vld [vmem:[%s1 + $0x1b8] sm:$0xf]
    %v143 = vld [vmem:[%s1 + $0x1bc] sm:$0xf]
    %v144 = vld [vmem:[%s1 + $0x1c0] sm:$0xf]
    %v145 = vld [vmem:[%s1 + $0x1c4] sm:$0xf]
    %v146 = vld [vmem:[%s1 + $0x1c8] sm:$0xf]
    %v147 = vld [vmem:[%s1 + $0x1cc] sm:$0xf]
    %v148 = vld [vmem:[%s1 + $0x1d0] sm:$0xf]
    %v149 = vld [vmem:[%s1 + $0x1d4] sm:$0xf]
    %v150 = vld [vmem:[%s1 + $0x1d8] sm:$0xf]
    %v151 = vld [vmem:[%s1 + $0x1dc] sm:$0xf]
    %v152 = vld [vmem:[%s1 + $0x1e0] sm:$0xf]
    %v153 = vld [vmem:[%s1 + $0x1e4] sm:$0xf]
    %v154 = vld [vmem:[%s1 + $0x1e8] sm:$0xf]
    %v155 = vld [vmem:[%s1 + $0x1ec] sm:$0xf]
    %v156 = vld [vmem:[%s1 + $0x1f0] sm:$0xf]
    %v157 = vld [vmem:[%s1 + $0x1f4] sm:$0xf]
    %v158 = vld [vmem:[%s1 + $0x1f8] sm:$0xf]
    %v159 = vld [vmem:[%s1 + $0x1fc] sm:$0xf]
    %v160 = vld [vmem:[%s2] sm:$0x1]
    %v162 = vlaneseq
    %v163 = vshrl.u32 %v162, 7
    %v164 = vsub.s32 0, %v163
    %v165 = vrot.slane %v160, %v164
    %v295 = vunpack.c.l.b16 %v32
    %v296 = vunpack.c.l.b16 %v33
    %v297 = vunpack.c.l.b16 %v34
    %v298 = vunpack.c.l.b16 %v35
    %v299 = vunpack.c.l.b16 %v36
    %v300 = vunpack.c.l.b16 %v37
    %v301 = vunpack.c.l.b16 %v38
    %v302 = vunpack.c.l.b16 %v39
    %v303 = vunpack.c.l.b16 %v40
    %v304 = vunpack.c.l.b16 %v41
    %v305 = vunpack.c.l.b16 %v42
    %v306 = vunpack.c.l.b16 %v43
    %v307 = vunpack.c.l.b16 %v44
    %v308 = vunpack.c.l.b16 %v45
    %v309 = vunpack.c.l.b16 %v46
    %v310 = vunpack.c.l.b16 %v47
    %v311 = vunpack.c.l.b16 %v48
    %v312 = vunpack.c.l.b16 %v49
    %v313 = vunpack.c.l.b16 %v50
    %v314 = vunpack.c.l.b16 %v51
    %v315 = vunpack.c.l.b16 %v52
    %v316 = vunpack.c.l.b16 %v53
    %v317 = vunpack.c.l.b16 %v54
    %v318 = vunpack.c.l.b16 %v55
    %v319 = vunpack.c.l.b16 %v56
    %v320 = vunpack.c.l.b16 %v57
    %v321 = vunpack.c.l.b16 %v58
    %v322 = vunpack.c.l.b16 %v59
    %v323 = vunpack.c.l.b16 %v60
    %v324 = vunpack.c.l.b16 %v61
    %v325 = vunpack.c.l.b16 %v62
    %v326 = vunpack.c.l.b16 %v63
    %v327 = vunpack.c.l.b16 %v64
    %v328 = vunpack.c.l.b16 %v65
    %v329 = vunpack.c.l.b16 %v66
    %v330 = vunpack.c.l.b16 %v67
    %v331 = vunpack.c.l.b16 %v68
    %v332 = vunpack.c.l.b16 %v69
    %v333 = vunpack.c.l.b16 %v70
    %v334 = vunpack.c.l.b16 %v71
    %v335 = vunpack.c.l.b16 %v72
    %v336 = vunpack.c.l.b16 %v73
    %v337 = vunpack.c.l.b16 %v74
    %v338 = vunpack.c.l.b16 %v75
    %v339 = vunpack.c.l.b16 %v76
    %v340 = vunpack.c.l.b16 %v77
    %v341 = vunpack.c.l.b16 %v78
    %v342 = vunpack.c.l.b16 %v79
    %v343 = vunpack.c.l.b16 %v80
    %v344 = vunpack.c.l.b16 %v81
    %v345 = vunpack.c.l.b16 %v82
    %v346 = vunpack.c.l.b16 %v83
    %v347 = vunpack.c.l.b16 %v84
    %v348 = vunpack.c.l.b16 %v85
    %v349 = vunpack.c.l.b16 %v86
    %v350 = vunpack.c.l.b16 %v87
    %v351 = vunpack.c.l.b16 %v88
    %v352 = vunpack.c.l.b16 %v89
    %v353 = vunpack.c.l.b16 %v90
    %v354 = vunpack.c.l.b16 %v91
    %v355 = vunpack.c.l.b16 %v92
    %v356 = vunpack.c.l.b16 %v93
    %v357 = vunpack.c.l.b16 %v94
    %v358 = vunpack.c.l.b16 %v95
    %v359 = vunpack.c.l.b16 %v96
    %v360 = vunpack.c.l.b16 %v97
    %v361 = vunpack.c.l.b16 %v98
    %v362 = vunpack.c.l.b16 %v99
    %v363 = vunpack.c.l.b16 %v100
    %v364 = vunpack.c.l.b16 %v101
    %v365 = vunpack.c.l.b16 %v102
    %v366 = vunpack.c.l.b16 %v103
    %v367 = vunpack.c.l.b16 %v104
    %v368 = vunpack.c.l.b16 %v105
    %v369 = vunpack.c.l.b16 %v106
    %v370 = vunpack.c.l.b16 %v107
    %v371 = vunpack.c.l.b16 %v108
    %v372 = vunpack.c.l.b16 %v109
    %v373 = vunpack.c.l.b16 %v110
    %v374 = vunpack.c.l.b16 %v111
    %v375 = vunpack.c.l.b16 %v112
    %v376 = vunpack.c.l.b16 %v113
    %v377 = vunpack.c.l.b16 %v114
    %v378 = vunpack.c.l.b16 %v115
    %v379 = vunpack.c.l.b16 %v116
    %v380 = vunpack.c.l.b16 %v117
    %v381 = vunpack.c.l.b16 %v118
    %v382 = vunpack.c.l.b16 %v119
    %v383 = vunpack.c.l.b16 %v120
    %v384 = vunpack.c.l.b16 %v121
    %v385 = vunpack.c.l.b16 %v122
    %v386 = vunpack.c.l.b16 %v123
    %v387 = vunpack.c.l.b16 %v124
    %v388 = vunpack.c.l.b16 %v125
    %v389 = vunpack.c.l.b16 %v126
    %v390 = vunpack.c.l.b16 %v127
    %v391 = vunpack.c.l.b16 %v128
    %v392 = vunpack.c.l.b16 %v129
    %v393 = vunpack.c.l.b16 %v130
    %v394 = vunpack.c.l.b16 %v131
    %v395 = vunpack.c.l.b16 %v132
    %v396 = vunpack.c.l.b16 %v133
    %v397 = vunpack.c.l.b16 %v134
    %v398 = vunpack.c.l.b16 %v135
    %v399 = vunpack.c.l.b16 %v136
    %v400 = vunpack.c.l.b16 %v137
    %v401 = vunpack.c.l.b16 %v138
    %v402 = vunpack.c.l.b16 %v139
    %v403 = vunpack.c.l.b16 %v140
    %v404 = vunpack.c.l.b16 %v141
    %v405 = vunpack.c.l.b16 %v142
    %v406 = vunpack.c.l.b16 %v143
    %v407 = vunpack.c.l.b16 %v144
    %v408 = vunpack.c.l.b16 %v145
    %v409 = vunpack.c.l.b16 %v146
    %v410 = vunpack.c.l.b16 %v147
    %v411 = vunpack.c.l.b16 %v148
    %v412 = vunpack.c.l.b16 %v149
    %v413 = vunpack.c.l.b16 %v150
    %v414 = vunpack.c.l.b16 %v151
    %v415 = vunpack.c.l.b16 %v152
    %v416 = vunpack.c.l.b16 %v153
    %v417 = vunpack.c.l.b16 %v154
    %v418 = vunpack.c.l.b16 %v155
    %v419 = vunpack.c.l.b16 %v156
    %v420 = vunpack.c.l.b16 %v157
    %v421 = vunpack.c.l.b16 %v158
    %v422 = vunpack.c.l.b16 %v159
    %v423 = vpack.c.b16 %v296, %v295
    %v424 = vpack.c.b16 %v298, %v297
    %v425 = vpack.c.b16 %v300, %v299
    %v426 = vpack.c.b16 %v302, %v301
    %v427 = vpack.c.b16 %v304, %v303
    %v428 = vpack.c.b16 %v306, %v305
    %v429 = vpack.c.b16 %v308, %v307
    %v430 = vpack.c.b16 %v310, %v309
    %v431 = vpack.c.b16 %v312, %v311
    %v432 = vpack.c.b16 %v314, %v313
    %v433 = vpack.c.b16 %v316, %v315
    %v434 = vpack.c.b16 %v318, %v317
    %v435 = vpack.c.b16 %v320, %v319
    %v436 = vpack.c.b16 %v322, %v321
    %v437 = vpack.c.b16 %v324, %v323
    %v438 = vpack.c.b16 %v326, %v325
    %v439 = vpack.c.b16 %v328, %v327
    %v440 = vpack.c.b16 %v330, %v329
    %v441 = vpack.c.b16 %v332, %v331
    %v442 = vpack.c.b16 %v334, %v333
    %v443 = vpack.c.b16 %v336, %v335
    %v444 = vpack.c.b16 %v338, %v337
    %v445 = vpack.c.b16 %v340, %v339
    %v446 = vpack.c.b16 %v342, %v341
    %v447 = vpack.c.b16 %v344, %v343
    %v448 = vpack.c.b16 %v346, %v345
    %v449 = vpack.c.b16 %v348, %v347
    %v450 = vpack.c.b16 %v350, %v349
    %v451 = vpack.c.b16 %v352, %v351
    %v452 = vpack.c.b16 %v354, %v353
    %v453 = vpack.c.b16 %v356, %v355
    %v454 = vpack.c.b16 %v358, %v357
    %v455 = vpack.c.b16 %v360, %v359
    %v456 = vpack.c.b16 %v362, %v361
    %v457 = vpack.c.b16 %v364, %v363
    %v458 = vpack.c.b16 %v366, %v365
    %v459 = vpack.c.b16 %v368, %v367
    %v460 = vpack.c.b16 %v370, %v369
    %v461 = vpack.c.b16 %v372, %v371
    %v462 = vpack.c.b16 %v374, %v373
    %v463 = vpack.c.b16 %v376, %v375
    %v464 = vpack.c.b16 %v378, %v377
    %v465 = vpack.c.b16 %v380, %v379
    %v466 = vpack.c.b16 %v382, %v381
    %v467 = vpack.c.b16 %v384, %v383
    %v468 = vpack.c.b16 %v386, %v385
    %v469 = vpack.c.b16 %v388, %v387
    %v470 = vpack.c.b16 %v390, %v389
    %v471 = vpack.c.b16 %v392, %v391
    %v472 = vpack.c.b16 %v394, %v393
    %v473 = vpack.c.b16 %v396, %v395
    %v474 = vpack.c.b16 %v398, %v397
    %v475 = vpack.c.b16 %v400, %v399
    %v476 = vpack.c.b16 %v402, %v401
    %v477 = vpack.c.b16 %v404, %v403
    %v478 = vpack.c.b16 %v406, %v405
    %v479 = vpack.c.b16 %v408, %v407
    %v480 = vpack.c.b16 %v410, %v409
    %v481 = vpack.c.b16 %v412, %v411
    %v482 = vpack.c.b16 %v414, %v413
    %v483 = vpack.c.b16 %v416, %v415
    %v484 = vpack.c.b16 %v418, %v417
    %v485 = vpack.c.b16 %v420, %v419
    %v486 = vpack.c.b16 %v422, %v421
    %551 = vmatprep.subr.bf16.mxu0 0
    %552 = vmatpush1.bf16.msra.mxu0 %v430
    %553 = vmatprep.subr.bf16.mxu0 0
    %554 = vmatpush1.bf16.msra.mxu0 %v429
    %555 = vmatprep.subr.bf16.mxu0 0
    %556 = vmatpush1.bf16.msra.mxu0 %v428
    %557 = vmatprep.subr.bf16.mxu0 0
    %558 = vmatpush1.bf16.msra.mxu0 %v427
    %559 = vmatprep.subr.bf16.mxu0 0
    %560 = vmatpush1.bf16.msra.mxu0 %v426
    %561 = vmatprep.subr.bf16.mxu0 0
    %562 = vmatpush1.bf16.msra.mxu0 %v425
    %563 = vmatprep.subr.bf16.mxu0 0
    %564 = vmatpush1.bf16.msra.mxu0 %v424
    %565 = vmatprep.subr.bf16.mxu0 0
    %566 = vmatpush1.bf16.msra.mxu0 %v423
    %567 = vmatprep.subr.bf16.mxu0 0
    %568 = vmatpush2.bf16.msra.mxu0 %v438
    %569 = vmatprep.subr.bf16.mxu0 0
    %570 = vmatpush2.bf16.msra.mxu0 %v437
    %571 = vmatprep.subr.bf16.mxu0 0
    %572 = vmatpush2.bf16.msra.mxu0 %v436
    %573 = vmatprep.subr.bf16.mxu0 0
    %574 = vmatpush2.bf16.msra.mxu0 %v435
    %575 = vmatprep.subr.bf16.mxu0 0
    %576 = vmatpush2.bf16.msra.mxu0 %v434
    %577 = vmatprep.subr.bf16.mxu0 0
    %578 = vmatpush2.bf16.msra.mxu0 %v433
    %579 = vmatprep.subr.bf16.mxu0 0
    %580 = vmatpush2.bf16.msra.mxu0 %v432
    %581 = vmatprep.subr.bf16.mxu0 0
    %582 = vmatpush2.bf16.msra.mxu0 %v431
    %583 = vmatprep.mubr.bf16.mxu0 %v25
    %584 = vmatmul.mubr.bf16.gmra.mxu0 %v24
    %v585 = vpop.f32.mrf.mxu0
    %v586 = vadd.f32 %v165, %v585
    %v587 = vpop.f32.mrf.mxu0
    %v588 = vpop.f32.mrf.mxu0
    %v589 = vpop.f32.mrf.mxu0
    %590 = vdwg.mxu0
    %591 = vmatprep.subr.bf16.mxu0 0
    %592 = vmatpush1.bf16.msra.mxu0 %v446
    %593 = vmatprep.subr.bf16.mxu0 0
    %594 = vmatpush1.bf16.msra.mxu0 %v445
    %595 = vmatprep.subr.bf16.mxu0 0
    %596 = vmatpush1.bf16.msra.mxu0 %v444
    %597 = vmatprep.subr.bf16.mxu0 0
    %598 = vmatpush1.bf16.msra.mxu0 %v443
    %599 = vmatprep.subr.bf16.mxu0 0
    %600 = vmatpush1.bf16.msra.mxu0 %v442
    %601 = vmatprep.subr.bf16.mxu0 0
    %602 = vmatpush1.bf16.msra.mxu0 %v441
    %603 = vmatprep.subr.bf16.mxu0 0
    %604 = vmatpush1.bf16.msra.mxu0 %v440
    %605 = vmatprep.subr.bf16.mxu0 0
    %606 = vmatpush1.bf16.msra.mxu0 %v439
    %607 = vmatprep.subr.bf16.mxu0 0
    %608 = vmatpush2.bf16.msra.mxu0 %v454
    %609 = vmatprep.subr.bf16.mxu0 0
    %610 = vmatpush2.bf16.msra.mxu0 %v453
    %611 = vmatprep.subr.bf16.mxu0 0
    %612 = vmatpush2.bf16.msra.mxu0 %v452
    %613 = vmatprep.subr.bf16.mxu0 0
    %614 = vmatpush2.bf16.msra.mxu0 %v451
    %615 = vmatprep.subr.bf16.mxu0 0
    %616 = vmatpush2.bf16.msra.mxu0 %v450
    %617 = vmatprep.subr.bf16.mxu0 0
    %618 = vmatpush2.bf16.msra.mxu0 %v449
    %619 = vmatprep.subr.bf16.mxu0 0
    %620 = vmatpush2.bf16.msra.mxu0 %v448
    %621 = vmatprep.subr.bf16.mxu0 0
    %622 = vmatpush2.bf16.msra.mxu0 %v447
    %623 = vmatprep.mubr.bf16.mxu0 %v27
    %624 = vmatmul.mubr.bf16.gmra.mxu0 %v26
    %v625 = vpop.f32.mrf.mxu0
    %v626 = vadd.f32 %v586, %v625
    %v627 = vpop.f32.mrf.mxu0
    %v628 = vpop.f32.mrf.mxu0
    %v629 = vpop.f32.mrf.mxu0
    %630 = vdwg.mxu0
    %631 = vmatprep.subr.bf16.mxu0 0
    %632 = vmatpush1.bf16.msra.mxu0 %v462
    %633 = vmatprep.subr.bf16.mxu0 0
    %634 = vmatpush1.bf16.msra.mxu0 %v461
    %635 = vmatprep.subr.bf16.mxu0 0
    %636 = vmatpush1.bf16.msra.mxu0 %v460
    %637 = vmatprep.subr.bf16.mxu0 0
    %638 = vmatpush1.bf16.msra.mxu0 %v459
    %639 = vmatprep.subr.bf16.mxu0 0
    %640 = vmatpush1.bf16.msra.mxu0 %v458
    %641 = vmatprep.subr.bf16.mxu0 0
    %642 = vmatpush1.bf16.msra.mxu0 %v457
    %643 = vmatprep.subr.bf16.mxu0 0
    %644 = vmatpush1.bf16.msra.mxu0 %v456
    %645 = vmatprep.subr.bf16.mxu0 0
    %646 = vmatpush1.bf16.msra.mxu0 %v455
    %647 = vmatprep.subr.bf16.mxu0 0
    %648 = vmatpush2.bf16.msra.mxu0 %v470
    %649 = vmatprep.subr.bf16.mxu0 0
    %650 = vmatpush2.bf16.msra.mxu0 %v469
    %651 = vmatprep.subr.bf16.mxu0 0
    %652 = vmatpush2.bf16.msra.mxu0 %v468
    %653 = vmatprep.subr.bf16.mxu0 0
    %654 = vmatpush2.bf16.msra.mxu0 %v467
    %655 = vmatprep.subr.bf16.mxu0 0
    %656 = vmatpush2.bf16.msra.mxu0 %v466
    %657 = vmatprep.subr.bf16.mxu0 0
    %658 = vmatpush2.bf16.msra.mxu0 %v465
    %659 = vmatprep.subr.bf16.mxu0 0
    %660 = vmatpush2.bf16.msra.mxu0 %v464
    %661 = vmatprep.subr.bf16.mxu0 0
    %662 = vmatpush2.bf16.msra.mxu0 %v463
    %663 = vmatprep.mubr.bf16.mxu0 %v29
    %664 = vmatmul.mubr.bf16.gmra.mxu0 %v28
    %v665 = vpop.f32.mrf.mxu0
    %v666 = vadd.f32 %v626, %v665
    %v667 = vpop.f32.mrf.mxu0
    %v668 = vpop.f32.mrf.mxu0
    %v669 = vpop.f32.mrf.mxu0
    %670 = vdwg.mxu0
    %671 = vmatprep.subr.bf16.mxu0 0
    %672 = vmatpush1.bf16.msra.mxu0 %v478
    %673 = vmatprep.subr.bf16.mxu0 0
    %674 = vmatpush1.bf16.msra.mxu0 %v477
    %675 = vmatprep.subr.bf16.mxu0 0
    %676 = vmatpush1.bf16.msra.mxu0 %v476
    %677 = vmatprep.subr.bf16.mxu0 0
    %678 = vmatpush1.bf16.msra.mxu0 %v475
    %679 = vmatprep.subr.bf16.mxu0 0
    %680 = vmatpush1.bf16.msra.mxu0 %v474
    %681 = vmatprep.subr.bf16.mxu0 0
    %682 = vmatpush1.bf16.msra.mxu0 %v473
    %683 = vmatprep.subr.bf16.mxu0 0
    %684 = vmatpush1.bf16.msra.mxu0 %v472
    %685 = vmatprep.subr.bf16.mxu0 0
    %686 = vmatpush1.bf16.msra.mxu0 %v471
    %687 = vmatprep.subr.bf16.mxu0 0
    %688 = vmatpush2.bf16.msra.mxu0 %v486
    %689 = vmatprep.subr.bf16.mxu0 0
    %690 = vmatpush2.bf16.msra.mxu0 %v485
    %691 = vmatprep.subr.bf16.mxu0 0
    %692 = vmatpush2.bf16.msra.mxu0 %v484
    %693 = vmatprep.subr.bf16.mxu0 0
    %694 = vmatpush2.bf16.msra.mxu0 %v483
    %695 = vmatprep.subr.bf16.mxu0 0
    %696 = vmatpush2.bf16.msra.mxu0 %v482
    %697 = vmatprep.subr.bf16.mxu0 0
    %698 = vmatpush2.bf16.msra.mxu0 %v481
    %699 = vmatprep.subr.bf16.mxu0 0
    %700 = vmatpush2.bf16.msra.mxu0 %v480
    %701 = vmatprep.subr.bf16.mxu0 0
    %702 = vmatpush2.bf16.msra.mxu0 %v479
    %703 = vmatprep.mubr.bf16.mxu0 %v31
    %704 = vmatmul.mubr.bf16.gmra.mxu0 %v30
    %v705 = vpop.f32.mrf.mxu0
    %v706 = vadd.f32 %v666, %v705
    %v707 = vpop.f32.mrf.mxu0
    %v708 = vpop.f32.mrf.mxu0
    %v709 = vpop.f32.mrf.mxu0
    %710 = vdwg.mxu0
    %vm711 = vcmask 80896
    %v712 = vsel %vm711, %v706, -inf
    %713 = vmax.xlane.f32.xlu0 %v712
    %v714 = vpop.xlane.xlu0 %713
    %v715 = vsub.f32 %v706, %v714
    %v716 = vmul.f32 %v715, 1.442695
    %v717 = vpow.pop %v716
    %v718 = vsel %vm711, %v717, 0.0
    %719 = vadd.xlane.f32.xlu0 %v718
    %v720 = vpop.xlane.xlu0 %719
    %v721 = vrcp.pop %v720
    %v722 = vmul.f32 %v717, %v721
    %v723 = vadd.f32 %v722, 0.0
    %vm724 = vcmask 162896
    %v725 = vsel %vm724, %v706, -inf
    %726 = vmax.xlane.f32.xlu0 %v725
    %v727 = vpop.xlane.xlu0 %726
    %v728 = vsub.f32 %v706, %v727
    %v729 = vmul.f32 %v728, 1.442695
    %v730 = vpow.pop %v729
    %732 = vrot.lane.b32.xlu0 %v730, 118
    %v733 = vpop.permute.xlu0 %732
    %v735 = vsel %vm711, %v733, 0.0
    %736 = vadd.xlane.f32.xlu0 %v735
    %v737 = vpop.xlane.xlu0 %736
    %v738 = vrcp.pop %v737
    %v739 = vmul.f32 %v730, %v738
    %741 = vrot.lane.b32.xlu0 %v739, 118
    %v742 = vpop.permute.xlu0 %741
    %v744 = vadd.f32 %v723, %v742
    %vm745 = vcmask 244896
    %v746 = vsel %vm745, %v706, -inf
    %747 = vmax.xlane.f32.xlu0 %v746
    %v748 = vpop.xlane.xlu0 %747
    %v749 = vsub.f32 %v706, %v748
    %v750 = vmul.f32 %v749, 1.442695
    %v751 = vpow.pop %v750
    %753 = vrot.lane.b32.xlu0 %v751, 108
    %v754 = vpop.permute.xlu0 %753
    %v756 = vsel %vm711, %v754, 0.0
    %757 = vadd.xlane.f32.xlu0 %v756
    %v758 = vpop.xlane.xlu0 %757
    %v759 = vrcp.pop %v758
    %v760 = vmul.f32 %v751, %v759
    %762 = vrot.lane.b32.xlu0 %v760, 108
    %v763 = vpop.permute.xlu0 %762
    %v765 = vadd.f32 %v744, %v763
    %766 = vst.msk [vmem:[#allocation2] sm:$0xff] %vm711, %v765
    // Predicated region
    $region14: #{tpu_custom_call.1} parent=1 // pred_check
      _
    $region15: #{tpu_custom_call.1} parent=1 // pred_check_branch
      %768 = sbr.rel (0) target = $region17
    $region16: #{tpu_custom_call.1} parent=1 // pred_region
      %s770 = ssub.s32 128, 128
      %771 = vsyncadd [#allocation3], %s770
      %s773 = sshll.u32 [#allocation2], 4
      %s774 = int_to_ptr.vmem [resolvable:$true] %s773
      %776 = dma.vmem_to_hbm [thread:$0]  %s774, 128, %s3, [#allocation3]
    $region17: #{tpu_custom_call.1} parent=1 // pred_fallthru
      _
    // Predicated region
    $region18: #{tpu_custom_call.1} parent=1 // pred_check
      _
    $region19: #{tpu_custom_call.1} parent=1 // pred_check_branch
      %778 = sbr.rel (0) target = $region21
    $region20: #{tpu_custom_call.1} parent=1 // pred_region
      %779 = dma.done [#allocation3], 128
    $region21: #{tpu_custom_call.1} parent=1 // pred_fallthru
      _
    %780 = vsyncpa [#allocation3], 1

</llo_original>
